<compile_context>
chip_gen: v6e
topology: v6e:2x2x1
jax: 0.10.0
libtpu: 0.0.40
codegen_flags: <defaults>
</compile_context>

<pallas_src>
import jax
import jax.numpy as jnp
from jax.experimental import pallas as pl
from jax.experimental.pallas import tpu as pltpu

# ---- small, synthetic dimensions (consistent with the module) ----
BATCH = 2
N_FEAT = 8            # number of encoder positions: features.shape[1]
ENCODER_DIM = 32
DECODER_DIM = 32
ATTENTION_DIM = 32


# ----------------------------------------------------------------------------
# Fused attention kernel: one MXU pass for both projections, tanh, scoring,
# softmax and the weighted context sum in a single kernel invocation (no grid).
# ----------------------------------------------------------------------------
def _attention_kernel(feat_ref, hid_ref, p_ref, out_ref):
    feat = feat_ref[...]                       # (B, N, E) f32
    hid = hid_ref[...]                         # (B, D)    f32
    B, N, E = feat.shape
    D = hid.shape[-1]
    A = p_ref.shape[-1]

    # packed parameter slab (built once at init, host side):
    #   rows [0:E)    = U.weight^T          (E, A)
    #   rows [E:E+D)  = W.weight^T          (D, A)
    #   row  E+D      = A.weight            (1, A)
    #   row  E+D+1    = U.bias + W.bias     (1, A)   (A.bias dropped: softmax
    #                                                  shift invariance)
    uw_ww = p_ref[0:E + D, :]                  # (E+D, A) stacked [U^T; W^T]
    aw = p_ref[E + D:E + D + 1, :]             # (1, A)
    bias = p_ref[E + D + 1:E + D + 2, :]       # (1, A)

    feat2d = feat.reshape(B * N, E)            # (B*N, E)

    # ---- single fused MXU pass for both projections -----------------------
    # block-diagonal LHS [[feat2d, 0], [0, hid]] : (B*N + B, E + D)
    lhs = jnp.concatenate(
        [jnp.concatenate([feat2d, jnp.zeros((B * N, D), jnp.float32)], axis=1),
         jnp.concatenate([jnp.zeros((B, E), jnp.float32), hid], axis=1)],
        axis=0)
    proj = jnp.dot(lhs, uw_ww, preferred_element_type=jnp.float32)  # (B*N+B, A)
    u_hs = proj[0:B * N, :]                    # (B*N, A) == U(features)
    w_ah = proj[B * N:B * N + B, :] + bias     # (B, A)   == W(hidden)+U.b+W.b

    # combined_states = tanh(u_hs + w_ah.unsqueeze(1))   (EUP tanh)
    comb = jnp.tanh(u_hs.reshape(B, N, A) + w_ah[:, None, :])        # (B, N, A)

    # attention_scores = A(comb).squeeze(2): VPU mul + XLU cross-lane reduce
    # (A.bias omitted -- it cannot change alpha or context)
    scores = jnp.sum(comb * aw.reshape(1, 1, A), axis=-1)            # (B, N)

    # softmax with deferred normalization for the context path
    m = jnp.max(scores, axis=-1, keepdims=True)
    e = jnp.exp(scores - m)                                          # (B, N)
    inv = pl.reciprocal(jnp.sum(e, axis=-1, keepdims=True), approx=True)  # (B,1)
    alpha = e * inv                                                  # (B, N)
    ctx = jnp.sum(feat * e[:, :, None], axis=1) * inv                # (B, E)

    # single packed output -> one store / one output DMA descriptor
    out_ref[...] = jnp.concatenate([alpha, ctx], axis=1)             # (B, N+E)


# ----------------------------------------------------------------------------
# Host-side helpers.
# ----------------------------------------------------------------------------
def pack_params(params):
    """Pack the three nn.Linear params into one (E+D+2, A) slab.

    Call ONCE at init (outside the jitted step) so no packing ops run per
    forward call. A.bias is intentionally dropped (softmax shift invariance).
    """
    return jnp.concatenate(
        [params["U_w"].T,                                 # (E, A)
         params["W_w"].T,                                 # (D, A)
         params["A_w"],                                   # (1, A)
         (params["U_b"] + params["W_b"])[None, :]],       # (1, A) folded bias
        axis=0).astype(jnp.float32)


def attention_forward(features, hidden_state, param_slab):
    """Single no-grid pallas_call; whole problem resident in VMEM."""
    B, N, E = features.shape
    vmem = pl.BlockSpec(memory_space=pltpu.MemorySpace.VMEM)
    packed = pl.pallas_call(
        _attention_kernel,
        out_shape=jax.ShapeDtypeStruct((B, N + E), jnp.float32),
        in_specs=[vmem, vmem, vmem],
        out_specs=vmem,
    )(features, hidden_state, param_slab)
    alpha = packed[:, :N]
    context = packed[:, N:]
    return alpha, context


# ----------------------------------------------------------------------------
# Pure-JAX reference (mirrors the PyTorch module exactly) and parameter init.
# ----------------------------------------------------------------------------
def attention_reference(features, hidden_state, p):
    u_hs = features @ p["U_w"].T + p["U_b"]                    # (B, N, A)
    w_ah = (hidden_state @ p["W_w"].T + p["W_b"])[:, None, :]  # (B, 1, A)
    combined = jnp.tanh(u_hs + w_ah)
    scores = (combined @ p["A_w"].T + p["A_b"])[..., 0]        # (B, N)
    alpha = jax.nn.softmax(scores, axis=1)
    context = jnp.sum(features * alpha[:, :, None], axis=1)    # (B, E)
    return alpha, context


def init_params(key, encoder_dim, decoder_dim, attention_dim):
    keys = iter(jax.random.split(key, 6))

    def nrm(shape, scale=0.2):
        return scale * jax.random.normal(next(keys), shape, jnp.float32)

    # PyTorch nn.Linear convention: weight is (out_features, in_features)
    return {
        "W_w": nrm((attention_dim, decoder_dim)), "W_b": nrm((attention_dim,)),
        "U_w": nrm((attention_dim, encoder_dim)), "U_b": nrm((attention_dim,)),
        "A_w": nrm((1, attention_dim)),           "A_b": nrm((1,)),
    }


if __name__ == "__main__":
    key = jax.random.PRNGKey(0)
    k_feat, k_hid, k_par = jax.random.split(key, 3)
    features = jax.random.normal(k_feat, (BATCH, N_FEAT, ENCODER_DIM), jnp.float32)
    hidden_state = jax.random.normal(k_hid, (BATCH, DECODER_DIM), jnp.float32)
    params = init_params(k_par, ENCODER_DIM, DECODER_DIM, ATTENTION_DIM)

    # Pack parameters ONCE, outside the jitted per-step path.
    param_slab = jax.block_until_ready(pack_params(params))

    fwd = jax.jit(attention_forward)
    alpha, context = fwd(features, hidden_state, param_slab)
    jax.block_until_ready((alpha, context))

    a_ref, c_ref = attention_reference(features, hidden_state, params)

    assert alpha.shape == (BATCH, N_FEAT)
    assert context.shape == (BATCH, ENCODER_DIM)
    assert bool(jnp.all(jnp.isfinite(alpha))) and bool(jnp.all(jnp.isfinite(context)))
    assert bool(jnp.allclose(alpha, a_ref, rtol=2e-2, atol=2e-3))
    assert bool(jnp.allclose(context, c_ref, rtol=2e-2, atol=2e-3))
    print("KERNEL_OK")
</pallas_src>

<mosaic_0001>
module attributes {stable_mosaic.version = 11 : i64} {
  func.func @_attention_kernel(%arg0: memref<2x8x32xf32, #tpu.memory_space<vmem>>, %arg1: memref<2x32xf32, #tpu.memory_space<vmem>>, %arg2: memref<66x32xf32, #tpu.memory_space<vmem>>, %arg3: memref<2x40xf32, #tpu.memory_space<vmem>>) attributes {dimension_semantics = [], scalar_prefetch = 0 : i64, scratch_operands = 0 : i64, tpu.core_type = #tpu.core_type<tc>} {
    %c0 = arith.constant 0 : index
    %c0_0 = arith.constant 0 : index
    %c0_1 = arith.constant 0 : index
    %0 = vector.load %arg0[%c0, %c0_0, %c0_1] : memref<2x8x32xf32, #tpu.memory_space<vmem>>, vector<2x8x32xf32>
    %c0_2 = arith.constant 0 : index
    %c0_3 = arith.constant 0 : index
    %1 = vector.load %arg1[%c0_2, %c0_3] : memref<2x32xf32, #tpu.memory_space<vmem>>, vector<2x32xf32>
    %c0_4 = arith.constant 0 : index
    %c0_5 = arith.constant 0 : index
    %2 = vector.load %arg2[%c0_4, %c0_5] : memref<66x32xf32, #tpu.memory_space<vmem>>, vector<64x32xf32>
    %c64 = arith.constant 64 : index
    %c0_6 = arith.constant 0 : index
    %3 = vector.load %arg2[%c64, %c0_6] : memref<66x32xf32, #tpu.memory_space<vmem>>, vector<1x32xf32>
    %c65 = arith.constant 65 : index
    %c0_7 = arith.constant 0 : index
    %4 = vector.load %arg2[%c65, %c0_7] : memref<66x32xf32, #tpu.memory_space<vmem>>, vector<1x32xf32>
    %5 = vector.shape_cast %0 : vector<2x8x32xf32> to vector<16x32xf32>
    %cst = arith.constant 0.000000e+00 : f32
    %6 = vector.broadcast %cst : f32 to vector<16x32xf32>
    %7 = tpu.concatenate %5, %6 in 1 : vector<16x32xf32>, vector<16x32xf32> -> vector<16x64xf32>
    %cst_8 = arith.constant 0.000000e+00 : f32
    %8 = vector.broadcast %cst_8 : f32 to vector<2x32xf32>
    %9 = tpu.concatenate %8, %1 in 1 : vector<2x32xf32>, vector<2x32xf32> -> vector<2x64xf32>
    %10 = tpu.concatenate %7, %9 in 0 : vector<16x64xf32>, vector<2x64xf32> -> vector<18x64xf32>
    %cst_9 = arith.constant dense<0.000000e+00> : vector<18x32xf32>
    %11 = tpu.matmul %10, %2, %cst_9 {dimension_numbers = #tpu.dot_dimension_numbers<[1], [0], [0], [1], [0, 0, 1, 1], [], []>} : vector<18x64xf32>, vector<64x32xf32>, vector<18x32xf32> -> vector<18x32xf32>
    %12 = vector.extract_strided_slice %11 {offsets = [0, 0], sizes = [16, 32], strides = [1, 1]} : vector<18x32xf32> to vector<16x32xf32>
    %13 = vector.extract_strided_slice %11 {offsets = [16, 0], sizes = [2, 32], strides = [1, 1]} : vector<18x32xf32> to vector<2x32xf32>
    %14 = vector.broadcast %4 : vector<1x32xf32> to vector<2x32xf32>
    %15 = arith.addf %13, %14 : vector<2x32xf32>
    %16 = vector.shape_cast %12 : vector<16x32xf32> to vector<2x8x32xf32>
    %17 = vector.shape_cast %15 : vector<2x32xf32> to vector<2x1x32xf32>
    %18 = vector.broadcast %17 : vector<2x1x32xf32> to vector<2x8x32xf32>
    %19 = arith.addf %16, %18 : vector<2x8x32xf32>
    %20 = math.tanh %19 : vector<2x8x32xf32>
    %21 = vector.shape_cast %3 : vector<1x32xf32> to vector<1x1x32xf32>
    %22 = vector.broadcast %21 : vector<1x1x32xf32> to vector<2x8x32xf32>
    %23 = arith.mulf %20, %22 : vector<2x8x32xf32>
    %cst_10 = arith.constant dense<0.000000e+00> : vector<2x8xf32>
    %24 = vector.multi_reduction <add>, %23, %cst_10 [2] : vector<2x8x32xf32> to vector<2x8xf32>
    %cst_11 = arith.constant dense<0xFF800000> : vector<2xf32>
    %25 = vector.multi_reduction <maximumf>, %24, %cst_11 [1] : vector<2x8xf32> to vector<2xf32>
    %26 = vector.shape_cast %25 : vector<2xf32> to vector<2x1xf32>
    %27 = vector.broadcast %26 : vector<2x1xf32> to vector<2x8xf32>
    %28 = arith.subf %24, %27 : vector<2x8xf32>
    %29 = math.exp %28 : vector<2x8xf32>
    %cst_12 = arith.constant dense<0.000000e+00> : vector<2xf32>
    %30 = vector.multi_reduction <add>, %29, %cst_12 [1] : vector<2x8xf32> to vector<2xf32>
    %31 = vector.shape_cast %30 : vector<2xf32> to vector<2x1xf32>
    %32 = tpu.reciprocal %31 {approx = true} : vector<2x1xf32> -> vector<2x1xf32>
    %33 = vector.broadcast %32 : vector<2x1xf32> to vector<2x8xf32>
    %34 = arith.mulf %29, %33 : vector<2x8xf32>
    %35 = vector.shape_cast %29 : vector<2x8xf32> to vector<2x8x1xf32>
    %36 = vector.broadcast %35 : vector<2x8x1xf32> to vector<2x8x32xf32>
    %37 = arith.mulf %0, %36 : vector<2x8x32xf32>
    %cst_13 = arith.constant dense<0.000000e+00> : vector<2x32xf32>
    %38 = vector.multi_reduction <add>, %37, %cst_13 [1] : vector<2x8x32xf32> to vector<2x32xf32>
    %39 = vector.broadcast %32 : vector<2x1xf32> to vector<2x32xf32>
    %40 = arith.mulf %38, %39 : vector<2x32xf32>
    %41 = tpu.concatenate %34, %40 in 1 : vector<2x8xf32>, vector<2x32xf32> -> vector<2x40xf32>
    %c0_14 = arith.constant 0 : index
    %c0_15 = arith.constant 0 : index
    %42 = vector.load %arg3[%c0_14, %c0_15] : memref<2x40xf32, #tpu.memory_space<vmem>>, vector<2x40xf32>
    tpu.vector_store %arg3[%c0_14, %c0_15], %41 {strides = array<i32>} : memref<2x40xf32, #tpu.memory_space<vmem>>, vector<2x40xf32>,
    return
  }
}

</mosaic_0001>

<llo_original>
// kernel: attention_forward.1
$region0: #{attention_forward.1}
  #allocation0 [shape = 'u32[]', space=smem, size = 0x4, offset = 0x4, fixed_abs, tag = 'smem constant byte address 0x4 - core index']
  #allocation1 [shape = 'u32[144,128]{1,0:T(1,128)}', space=vmem, size = 0x12000, scoped, tag = 'internal scratch']
  %s0 = inlined_call_operand.vmem [shape: f32[2,8,32], index: 0, kind: input, shape index: {}]
  %s1 = inlined_call_operand.vmem [shape: f32[2,32], index: 1, kind: input, shape index: {}]
  %s2 = inlined_call_operand.vmem [shape: f32[66,32], index: 2, kind: input, shape index: {}]
  %s3 = inlined_call_operand.vmem [shape: f32[2,40], index: 3, kind: output, shape index: {}]
  %s4 = sld [smem:[#allocation0]]
  $region22: #{attention_forward.1} parent=0
    _
  %s6 = ssub.s32 1, %s4
  %s7 = scalar_select 0, %s6, %s4
  // Predicated region
  $region2: #{attention_forward.1} parent=0 // pred_check
    _
  $region3: #{attention_forward.1} parent=0 // pred_check_branch
    %9 = sbr.rel (0) target = $region5
  $region4: #{attention_forward.1} parent=0 // pred_region
    _
  $region5: #{attention_forward.1} parent=0 // pred_fallthru
    _
  // Predicated region
  $region6: #{attention_forward.1} parent=0 // pred_check
    _
  $region7: #{attention_forward.1} parent=0 // pred_check_branch
    %11 = sbr.rel (0) target = $region9
  $region8: #{attention_forward.1} parent=0 // pred_region
    _
  $region9: #{attention_forward.1} parent=0 // pred_fallthru
    _
  // Predicated region
  $region10: #{attention_forward.1} parent=0 // pred_check
    _
  $region11: #{attention_forward.1} parent=0 // pred_check_branch
    %13 = sbr.rel (0) target = $region13
  $region12: #{attention_forward.1} parent=0 // pred_region
    _
  $region13: #{attention_forward.1} parent=0 // pred_fallthru
    _
  %v14 = vld [vmem:[%s0] sm:$0xff]
  %v15 = vld [vmem:[%s0 + $0x8] sm:$0xff]
  %v16 = vld [vmem:[%s1] sm:$0x3]
  %v17 = vld [vmem:[%s2] sm:$0xff]
  %v18 = vld [vmem:[%s2 + $0x8] sm:$0xff]
  %v19 = vld [vmem:[%s2 + $0x10] sm:$0xff]
  %v20 = vld [vmem:[%s2 + $0x18] sm:$0xff]
  %v21 = vld [vmem:[%s2 + $0x20] sm:$0xff]
  %v22 = vld [vmem:[%s2 + $0x28] sm:$0xff]
  %v23 = vld [vmem:[%s2 + $0x30] sm:$0xff]
  %v24 = vld [vmem:[%s2 + $0x38] sm:$0xff]
  %v25 = vld [vmem:[%s2 + $0x40] sm:$0x1]
  %v26 = vld [vmem:[%s2 + $0x41] sm:$0x1]
  %vm27 = vcmask 261120
  %v28 = vsel %vm27, %v14, 0.0
  %v29 = vsel %vm27, %v15, 0.0
  %31 = vrot.lane.b32.xlu0 %v16, 32
  %v32 = vpop.permute.xlu0 %31
  %v34 = vsel %vm27, 0.0, %v32
  %vm35 = vcmask 523264
  %v37 = vsel %vm35, %v28, 0
  %v40 = vsel %vm35, %v29, 0
  %v43 = vsel %vm35, %v34, 0
  %45 = vmatprep.subr.mxu0 0.0
  %46 = vmatpush1.msra.mxu0 0.0
  %47 = vmatprep.subr.mxu0 0.0
  %48 = vmatpush1.msra.mxu0 0.0
  %49 = vmatprep.subr.mxu0 0.0
  %50 = vmatpush1.msra.mxu0 0.0
  %51 = vmatprep.subr.mxu0 0.0
  %52 = vmatpush1.msra.mxu0 0.0
  %53 = vmatprep.subr.mxu0 0.0
  %54 = vmatpush1.msra.mxu0 0.0
  %55 = vmatprep.subr.mxu0 0.0
  %56 = vmatpush1.msra.mxu0 0.0
  %57 = vmatprep.subr.mxu0 0.0
  %58 = vmatpush1.msra.mxu0 0.0
  %59 = vmatprep.subr.mxu0 0.0
  %60 = vmatpush1.msra.mxu0 0.0
  %61 = vmatprep.subr.mxu0 0.0
  %62 = vmatpush1.msra.mxu0 %v24
  %63 = vmatprep.subr.mxu0 0.0
  %64 = vmatpush1.msra.mxu0 %v23
  %65 = vmatprep.subr.mxu0 0.0
  %66 = vmatpush1.msra.mxu0 %v22
  %67 = vmatprep.subr.mxu0 0.0
  %68 = vmatpush1.msra.mxu0 %v21
  %69 = vmatprep.subr.mxu0 0.0
  %70 = vmatpush1.msra.mxu0 %v20
  %71 = vmatprep.subr.mxu0 0.0
  %72 = vmatpush1.msra.mxu0 %v19
  %73 = vmatprep.subr.mxu0 0.0
  %74 = vmatpush1.msra.mxu0 %v18
  %75 = vmatprep.subr.mxu0 0.0
  %76 = vmatpush1.msra.mxu0 %v17
  %77 = vmatprep.subr.mxu0 0.0
  %78 = vmatpush2.msra.mxu0 0.0
  %79 = vmatprep.subr.mxu0 0.0
  %80 = vmatpush2.msra.mxu0 0.0
  %81 = vmatprep.subr.mxu0 0.0
  %82 = vmatpush2.msra.mxu0 0.0
  %83 = vmatprep.subr.mxu0 0.0
  %84 = vmatpush2.msra.mxu0 0.0
  %85 = vmatprep.subr.mxu0 0.0
  %86 = vmatpush2.msra.mxu0 0.0
  %87 = vmatprep.subr.mxu0 0.0
  %88 = vmatpush2.msra.mxu0 0.0
  %89 = vmatprep.subr.mxu0 0.0
  %90 = vmatpush2.msra.mxu0 0.0
  %91 = vmatprep.subr.mxu0 0.0
  %92 = vmatpush2.msra.mxu0 0.0
  %93 = vmatprep.subr.mxu0 0.0
  %94 = vmatpush2.msra.mxu0 0.0
  %95 = vmatprep.subr.mxu0 0.0
  %96 = vmatpush2.msra.mxu0 0.0
  %97 = vmatprep.subr.mxu0 0.0
  %98 = vmatpush2.msra.mxu0 0.0
  %99 = vmatprep.subr.mxu0 0.0
  %100 = vmatpush2.msra.mxu0 0.0
  %101 = vmatprep.subr.mxu0 0.0
  %102 = vmatpush2.msra.mxu0 0.0
  %103 = vmatprep.subr.mxu0 0.0
  %104 = vmatpush2.msra.mxu0 0.0
  %105 = vmatprep.subr.mxu0 0.0
  %106 = vmatpush2.msra.mxu0 0.0
  %107 = vmatprep.subr.mxu0 0.0
  %108 = vmatpush2.msra.mxu0 0.0
  %109 = vmatprep.mubr.f32.mxu0 0.0
  %110 = vmatmul.mubr.f32.gmra.mxu0 %v37
  %v111 = vpop.f32.mrf.mxu0
  %v112 = vadd.f32 0.0, %v111
  %v113 = vpop.f32.mrf.mxu0
  %114 = vmatprep.mubr.f32.mxu0 0.0
  %115 = vmatmul.mubr.f32.gmra.mxu0 %v40
  %v116 = vpop.f32.mrf.mxu0
  %v117 = vadd.f32 0.0, %v116
  %v118 = vpop.f32.mrf.mxu0
  %119 = vmatprep.mubr.f32.mxu0 0.0
  %120 = vmatmul.mubr.f32.gmra.mxu0 %v43
  %v121 = vpop.f32.mrf.mxu0
  %v122 = vadd.f32 0.0, %v121
  %v123 = vpop.f32.mrf.mxu0
  %124 = vdwg.mxu0
  %v125 = vlaneseq
  %v126 = vshrl.u32 %v125, 7
  %v127 = vsub.s32 0, %v126
  %v128 = vrot.slane %v26, %v127
  %v129 = vadd.f32 %v122, %v128
  %v132 = vunpack.c.l.s4 1966171168
  %v133 = vunpack.c.0.s8 %v132
  %v134 = vlaneseq
  %v135 = vshrl.u32 %v134, 7
  %v136 = vsub.s32 %v133, %v135
  %v137 = vrot.slane %v129, %v136
  %v138 = vcombine.high %v137, %v137
  %v140 = vunpack.c.l.s4 1966171168
  %v141 = vunpack.c.0.s8 %v140
  %v142 = vlaneseq
  %v143 = vshrl.u32 %v142, 7
  %v144 = vsub.s32 %v141, %v143
  %v145 = vrot.slane %v137, %v144
  %v147 = vunpack.c.l.s4 1966171168
  %v148 = vunpack.c.0.s8 %v147
  %v149 = vlaneseq
  %v150 = vshrl.u32 %v149, 7
  %v151 = vsub.s32 %v148, %v150
  %v152 = vrot.slane %v138, %v151
  %v153 = vlaneseq
  %v154 = vshrl.u32 %v153, 7
  %v155 = vsub.s32 0, %v154
  %v156 = vrot.slane %v145, %v155
  %v157 = vlaneseq
  %v158 = vshrl.u32 %v157, 7
  %v159 = vsub.s32 0, %v158
  %v160 = vrot.slane %v152, %v159
  %v163 = vadd.f32 %v112, %v156
  %v164 = vadd.f32 %v117, %v160
  %v165 = vtanh.pop %v163
  %v166 = vtanh.pop %v164
  %v167 = vlaneseq
  %v168 = vshrl.u32 %v167, 7
  %v169 = vsub.s32 0, %v168
  %v170 = vrot.slane %v25, %v169
  %v171 = vmul.f32 %v165, %v170
  %v172 = vmul.f32 %v166, %v170
  %v173 = vsel %vm27, %v171, 0.0
  %174 = vadd.xlane.f32.xlu0 %v173
  %v175 = vpop.xlane.xlu0 %174
  %v176 = vsel %vm27, %v172, 0.0
  %177 = vadd.xlane.f32.xlu0 %v176
  %v178 = vpop.xlane.xlu0 %177
  %v181 = vlaneseq
  %v182 = vand.u32 %v181, 127
  %v183 = vlaneseq
  %v184 = vshrl.u32 %v183, 7
  %v185 = vsub.s32 %v182, %v184
  %v186 = vrot.slane %v175, %v185
  %v187 = vlaneseq
  %v188 = vshrl.u32 %v187, 7
  %v189 = vsub.s32 %v182, %v188
  %v190 = vrot.slane %v178, %v189
  %vm191 = vcmask 1041409
  %v192 = vsel %vm191, %v190, %v186
  %vm194 = vcmask 58368
  %v195 = vsel %vm194, %v192, -inf
  %196 = vmax.xlane.f32.xlu0 %v195
  %v197 = vpop.xlane.xlu0 %196
  %v199 = vlaneseq
  %v200 = vshrl.u32 %v199, 7
  %v201 = vsub.s32 0, %v200
  %v202 = vrot.slane %v197, %v201
  %v203 = vlaneseq
  %v204 = vshrl.u32 %v203, 7
  %v205 = vsub.s32 1, %v204
  %v206 = vrot.slane %v197, %v205
  %v209 = vsub.f32 %v175, %v202
  %v210 = vsub.f32 %v178, %v206
  %v211 = vmul.f32 %v209, 1.442695
  %v212 = vpow.pop %v211
  %v213 = vmul.f32 %v210, 1.442695
  %v214 = vpow.pop %v213
  %217 = vset.pattern.permute.xlu0 0
  %218 = vperm.xlu0 %217, %v212
  %v219 = vpop.permute.xlu0 %218
  %220 = vset.pattern.permute.xlu0 0
  %221 = vperm.xlu0 %220, %v214
  %v222 = vpop.permute.xlu0 %221
  %v223 = vlaneseq
  %v224 = vshrl.u32 %v223, 7
  %v225 = vsub.s32 %v182, %v224
  %v226 = vrot.slane %v219, %v225
  %v227 = vlaneseq
  %v228 = vshrl.u32 %v227, 7
  %v229 = vsub.s32 %v182, %v228
  %v230 = vrot.slane %v222, %v229
  %v231 = vsel %vm191, %v230, %v226
  %v233 = vsel %vm194, %v231, 0.0
  %234 = vadd.xlane.f32.xlu0 %v233
  %v235 = vpop.xlane.xlu0 %234
  %v236 = vrcp.pop %v235
  %v238 = vlaneseq
  %v239 = vshrl.u32 %v238, 7
  %v240 = vsub.s32 0, %v239
  %v241 = vrot.slane %v236, %v240
  %v242 = vlaneseq
  %v243 = vshrl.u32 %v242, 7
  %v244 = vsub.s32 1, %v243
  %v245 = vrot.slane %v236, %v244
  %v248 = vmul.f32 %v212, %v241
  %v249 = vmul.f32 %v214, %v245
  %v252 = vmul.f32 %v14, %v219
  %v253 = vmul.f32 %v15, %v222
  %v254 = vsel %vm27, %v252, 0.0
  %v255 = vrot.slane %v254, 4
  %v256 = vadd.f32 %v254, %v255
  %v257 = vrot.slane %v256, 2
  %v258 = vadd.f32 %v256, %v257
  %v259 = vrot.slane %v258, 1
  %v260 = vadd.f32 %v258, %v259
  %v261 = vsel %vm27, %v253, 0.0
  %v262 = vrot.slane %v261, 4
  %v263 = vadd.f32 %v261, %v262
  %v264 = vrot.slane %v263, 2
  %v265 = vadd.f32 %v263, %v264
  %v266 = vrot.slane %v265, 1
  %v267 = vadd.f32 %v265, %v266
  %v268 = vrot.slane %v236, 1
  %v271 = vmul.f32 %v260, %v236
  %v272 = vmul.f32 %v267, %v268
  %275 = vset.pattern.permute.xlu0 0
  %276 = vperm.xlu0 %275, %v248
  %v277 = vpop.permute.xlu0 %276
  %278 = vset.pattern.permute.xlu0 0
  %279 = vperm.xlu0 %278, %v249
  %v280 = vpop.permute.xlu0 %279
  %v281 = vlaneseq
  %v282 = vshrl.u32 %v281, 7
  %v283 = vsub.s32 %v182, %v282
  %v284 = vrot.slane %v277, %v283
  %v285 = vlaneseq
  %v286 = vshrl.u32 %v285, 7
  %v287 = vsub.s32 %v182, %v286
  %v288 = vrot.slane %v280, %v287
  %v289 = vsel %vm191, %v288, %v284
  %v293 = vrot.slane %v272, 7
  %v294 = vsel %vm191, %v293, %v271
  %295 = vrot.lane.b32.xlu0 %v294, 8
  %v296 = vpop.permute.xlu0 %295
  %vm298 = vcmask 64512
  %v299 = vsel %vm298, %v289, %v296
  %vm300 = vcmask 320512
  %301 = vst.msk [vmem:[%s3] sm:$0x3] %vm300, %v299
  // Predicated region
  $region14: #{attention_forward.1} parent=0 // pred_check
    _
  $region15: #{attention_forward.1} parent=0 // pred_check_branch
    %303 = sbr.rel (0) target = $region17
  $region16: #{attention_forward.1} parent=0 // pred_region
    _
  $region17: #{attention_forward.1} parent=0 // pred_fallthru
    _
  // Predicated region
  $region18: #{attention_forward.1} parent=0 // pred_check
    _
  $region19: #{attention_forward.1} parent=0 // pred_check_branch
    %305 = sbr.rel (0) target = $region21
  $region20: #{attention_forward.1} parent=0 // pred_region
    _
  $region21: #{attention_forward.1} parent=0 // pred_fallthru
    _

</llo_original>
